<compile_context>
chip_gen: v6e
topology: v6e:2x2x1
jax: 0.10.0
libtpu: 0.0.40
codegen_flags: <defaults>
</compile_context>

<pallas_src>
import math
import functools

import jax
import jax.numpy as jnp
from jax.experimental import pallas as pl
from jax.experimental.pallas import tpu as pltpu


# Contract x dim 1 with weight dim 1  ==  x @ W.T  (PyTorch Linear, no transpose copy).
_TRANS_B = (((1,), (1,)), ((), ()))


def _round_up(a: int, b: int) -> int:
    return (a + b - 1) // b * b


def _block_kernel(x_ref, w_ref, b_ref, o_ref, *, compute_dtype=None):
    """One (row-tile, out-col-tile) of  o = x + GELU(x @ W.T + b).

    x_ref : (TM, H)   input rows (residual source, full hidden dim)
    w_ref : (TN, H)   weight rows, PyTorch (out, in) layout
    b_ref : (1, TN)   bias slice
    o_ref : (TM, TN)  output tile
    """
    x = x_ref[...]                                        # (TM, H)
    w = w_ref[...]                                        # (TN, H)

    if compute_dtype is not None:                         # opt-in bf16 MXU path
        xm = x.astype(compute_dtype)
        wm = w.astype(compute_dtype)
    else:                                                 # exact torch f32 numerics
        xm, wm = x, w

    # Linear: y = x @ W.T + b ; MXU accumulates in f32.
    y = jax.lax.dot_general(xm, wm, _TRANS_B, preferred_element_type=jnp.float32)
    y = y + b_ref[...].astype(jnp.float32)

    # Exact (erf-based) GELU — matches torch.nn.GELU() default (approximate='none').
    inv_sqrt2 = jnp.float32(1.0 / math.sqrt(2.0))
    g = 0.5 * y * (1.0 + jax.lax.erf(y * inv_sqrt2))

    # Residual add: matching column window of x.
    tn = o_ref.shape[-1]
    if x_ref.shape[-1] == tn:                             # single N step: full width
        x_res = x
    else:                                                 # N-tiled: slice columns
        j = pl.program_id(1)
        col0 = pl.multiple_of(j * tn, tn)
        x_res = x_ref[:, pl.ds(col0, tn)]

    o_ref[...] = (x_res.astype(jnp.float32) + g).astype(o_ref.dtype)


@functools.lru_cache(maxsize=1)
def _vmem_budget_bytes() -> int:
    """Device-aware VMEM budget with headroom for compiler-internal scratch."""
    cap = 64 << 20                                        # conservative default (v7x per-TC)
    try:
        cap = int(pltpu.get_tpu_info().vmem_capacity_bytes)
    except Exception:
        pass
    if cap >= (120 << 20):                                # 128 MiB parts (v5e / v6e)
        return 100 << 20
    # 64 MiB parts (v7x) or smaller/unknown: keep >= 8 MiB of headroom.
    return min(56 << 20, max(cap - (8 << 20), 16 << 20))


def _choose_tiles(M: int, H: int, itemsize: int, budget: int):
    """Return (tm, tn, weight_buffers).  weight_buffers == 1 means the resident
    (H, H) weight/bias blocks are single-buffered via pl.Buffered(1)."""
    m_cap = max(8, _round_up(M, 8))
    tms = (512, 256, 128, 64, 32, 16, 8)

    def fits(nbytes):
        return nbytes * 1.1 + (1 << 20) <= budget

    def need_resident(tm, wbufs):                         # tn == H
        return (wbufs * (H * H + 8 * H) + 4 * tm * H) * itemsize

    def need_streamed(tm, tn):                            # tn < H
        return (2 * tm * H + 2 * tn * H + 16 * tn + 2 * tm * tn) * itemsize

    def best_resident(min_tm):
        for tm in tms:
            tm = min(tm, m_cap)
            if tm < min_tm:
                break
            for wbufs in (2, 1):                          # prefer default buffering
                if fits(need_resident(tm, wbufs)):
                    return tm, H, wbufs
        return None

    def best_streamed():
        if H % 128:
            return None
        for tm in tms:                                    # big tm first: weight HBM
            tm_c = min(tm, m_cap)                         # traffic = ceil(M/tm) * H^2
            for tn in (512, 256, 128):
                if H % tn:
                    continue
                if fits(need_streamed(tm_c, tn)):
                    return tm_c, tn, 2
        return None

    # Prefer a fully resident weight (read from HBM once) while keeping the row
    # tile MXU-friendly; otherwise stream weight tiles with the biggest tm.
    choice = best_resident(min(128, m_cap))
    if choice is None:
        choice = best_streamed()
    if choice is None:
        choice = best_resident(8)
    if choice is None:
        # TODO(synk): K-tiled accumulator path for f32 hidden sizes too large for
        # either configuration above.
        choice = (min(8, m_cap), H, 1)
    return choice


def block_forward(x, weight, bias, *, tile_m=None, tile_n=None, compute_dtype=None,
                  vmem_budget_bytes=None):
    """x: (B, S, H).  weight: (H, H) PyTorch (out, in) layout.  bias: (H,)."""
    B, S, H = x.shape
    M = B * S
    itemsize = jnp.dtype(x.dtype).itemsize
    budget = _vmem_budget_bytes() if vmem_budget_bytes is None else int(vmem_budget_bytes)

    if tile_m is None and tile_n is None:
        tm, tn, wbufs = _choose_tiles(M, H, itemsize, budget)
    else:
        tm = min(tile_m or 256, max(8, _round_up(M, 8)))
        tn = tile_n or H
        wbufs = 2
    assert tm % 8 == 0
    assert tn == H or (H % tn == 0 and tn % 128 == 0), \
        "tile_n must be a multiple of 128 that divides H"

    x2d = x.reshape(M, H)                                 # free reshape, no HBM copy
    b2d = bias.reshape(1, H)

    n_i = pl.cdiv(M, tm)                                  # ragged last row block masked
    n_j = H // tn
    grid = (n_i, n_j)

    # When resident (tn == H) the weight/bias index_maps are constant -> DMA'd once;
    # single-buffer them only when that is what makes residency fit in VMEM.
    wb_kwargs = dict(pipeline_mode=pl.Buffered(1)) if wbufs == 1 else {}
    in_specs = [
        pl.BlockSpec((tm, H), lambda i, j: (i, 0)),               # x rows (resident over j)
        pl.BlockSpec((tn, H), lambda i, j: (j, 0), **wb_kwargs),  # weight rows (out, in)
        pl.BlockSpec((1, tn), lambda i, j: (0, j), **wb_kwargs),  # bias slice
    ]
    out_spec = pl.BlockSpec((tm, tn), lambda i, j: (i, j))

    weight_reads = H * H * (n_i if n_j > 1 else 1)        # actual re-streaming count
    cost = pl.CostEstimate(
        flops=2 * M * H * H,
        transcendentals=M * H,
        bytes_accessed=(2 * M * H + weight_reads + H) * itemsize,
    )

    kernel = functools.partial(_block_kernel, compute_dtype=compute_dtype)

    out2d = pl.pallas_call(
        kernel,
        out_shape=jax.ShapeDtypeStruct((M, H), x.dtype),
        grid_spec=pltpu.PrefetchScalarGridSpec(
            num_scalar_prefetch=0,
            grid=grid,
            in_specs=in_specs,
            out_specs=out_spec,
        ),
        compiler_params=pltpu.CompilerParams(
            # Row axis parallel: megacore (v7x) splits rows, so each core fetches
            # only its own x tiles; the output-column axis stays sequential.
            dimension_semantics=("parallel", "arbitrary"),
            vmem_limit_bytes=int(budget),
        ),
        cost_estimate=cost,
    )(x2d, weight, b2d)

    return out2d.reshape(B, S, H)


def _reference(x, weight, bias):
    """Pure-JAX reference matching the PyTorch forward (exact GELU)."""
    y = jnp.einsum("bsh,oh->bso", x, weight) + bias
    g = 0.5 * y * (1.0 + jax.lax.erf(y / jnp.sqrt(2.0)))
    return x + g


if __name__ == "__main__":
    key = jax.random.PRNGKey(0)

    def run_case(B, S, H, case_key, **kwargs):
        kx, kwt, kb = jax.random.split(case_key, 3)
        # nn.Linear-style init: W, b ~ U(-1/sqrt(in), 1/sqrt(in))
        bound = 1.0 / math.sqrt(H)
        weight = jax.random.uniform(kwt, (H, H), jnp.float32, -bound, bound)   # (out, in)
        bias = jax.random.uniform(kb, (H,), jnp.float32, -bound, bound)
        x = jax.random.normal(kx, (B, S, H), jnp.float32)

        out = jax.block_until_ready(block_forward(x, weight, bias, **kwargs))
        ref = _reference(x, weight, bias)
        assert out.shape == (B, S, H)
        assert jnp.allclose(out, ref, atol=1e-5, rtol=1e-5), "mismatch vs reference"

    k1, k2, k3 = jax.random.split(key, 3)
    # Resident-weight path at the module's natural small shapes.
    run_case(2, 8, 32, k1)
    # Ragged row count (M=15): exercises the masked last row block (no jnp.pad).
    run_case(3, 5, 32, k2)
    # Forced N-tiled (streamed-weight) path: exercises the residual column slice
    # and a ragged last row block (M=40, tm=16, tn=128 on H=256).
    run_case(5, 8, 256, k3, tile_m=16, tile_n=128)

    print("KERNEL_OK")
</pallas_src>

<mosaic_0001>
module attributes {stable_mosaic.version = 11 : i64} {
  func.func @_block_kernel(%arg0: i32, %arg1: i32, %arg2: memref<16x32xf32, #tpu.memory_space<vmem>>, %arg3: memref<32x32xf32, #tpu.memory_space<vmem>>, %arg4: memref<1x32xf32, #tpu.memory_space<vmem>>, %arg5: memref<16x32xf32, #tpu.memory_space<vmem>>) attributes {dimension_semantics = [#tpu.dimension_semantics<parallel>, #tpu.dimension_semantics<arbitrary>], iteration_bounds = array<i64: 1, 1>, scalar_prefetch = 0 : i64, scratch_operands = 0 : i64, tpu.core_type = #tpu.core_type<tc>, window_params = [{transform_indices = @transform_0, window_bounds = array<i64: 16, 32>}, {transform_indices = @transform_1, window_bounds = array<i64: 32, 32>}, {transform_indices = @transform_2, window_bounds = array<i64: 1, 32>}, {transform_indices = @transform_3, window_bounds = array<i64: 16, 32>}]} {
    %c0 = arith.constant 0 : index
    %c0_0 = arith.constant 0 : index
    %0 = vector.load %arg2[%c0, %c0_0] : memref<16x32xf32, #tpu.memory_space<vmem>>, vector<16x32xf32>
    %c0_1 = arith.constant 0 : index
    %c0_2 = arith.constant 0 : index
    %1 = vector.load %arg3[%c0_1, %c0_2] : memref<32x32xf32, #tpu.memory_space<vmem>>, vector<32x32xf32>
    %cst = arith.constant dense<0.000000e+00> : vector<16x32xf32>
    %2 = tpu.matmul %0, %1, %cst {dimension_numbers = #tpu.dot_dimension_numbers<[1], [1], [0], [0], [0, 0, 1, 0], [], []>} : vector<16x32xf32>, vector<32x32xf32>, vector<16x32xf32> -> vector<16x32xf32>
    %c0_3 = arith.constant 0 : index
    %c0_4 = arith.constant 0 : index
    %3 = vector.load %arg4[%c0_3, %c0_4] : memref<1x32xf32, #tpu.memory_space<vmem>>, vector<1x32xf32>
    %4 = vector.broadcast %3 : vector<1x32xf32> to vector<16x32xf32>
    %5 = arith.addf %2, %4 : vector<16x32xf32>
    %cst_5 = arith.constant 5.000000e-01 : f32
    %6 = vector.broadcast %cst_5 : f32 to vector<16x32xf32>
    %7 = arith.mulf %6, %5 : vector<16x32xf32>
    %cst_6 = arith.constant 0.707106769 : f32
    %8 = vector.broadcast %cst_6 : f32 to vector<16x32xf32>
    %9 = arith.mulf %5, %8 : vector<16x32xf32>
    %10 = math.erf %9 : vector<16x32xf32>
    %cst_7 = arith.constant 1.000000e+00 : f32
    %11 = vector.broadcast %cst_7 : f32 to vector<16x32xf32>
    %12 = arith.addf %11, %10 : vector<16x32xf32>
    %13 = arith.mulf %7, %12 : vector<16x32xf32>
    %14 = arith.addf %0, %13 : vector<16x32xf32>
    %c0_8 = arith.constant 0 : index
    %c0_9 = arith.constant 0 : index
    %15 = vector.load %arg5[%c0_8, %c0_9] : memref<16x32xf32, #tpu.memory_space<vmem>>, vector<16x32xf32>
    tpu.vector_store %arg5[%c0_8, %c0_9], %14 {strides = array<i32>} : memref<16x32xf32, #tpu.memory_space<vmem>>, vector<16x32xf32>,
    return
  }
  func.func @transform_0(%arg0: i32, %arg1: i32) -> (i32, i32) {
    %c0_i32 = arith.constant 0 : i32
    %c0_i32_0 = arith.constant 0 : i32
    return %arg0, %c0_i32 : i32, i32
  }
  func.func @transform_1(%arg0: i32, %arg1: i32) -> (i32, i32) {
    %c0_i32 = arith.constant 0 : i32
    %c0_i32_0 = arith.constant 0 : i32
    return %arg1, %c0_i32 : i32, i32
  }
  func.func @transform_2(%arg0: i32, %arg1: i32) -> (i32, i32) {
    %c0_i32 = arith.constant 0 : i32
    %c0_i32_0 = arith.constant 0 : i32
    return %c0_i32, %arg1 : i32, i32
  }
  func.func @transform_3(%arg0: i32, %arg1: i32) -> (i32, i32) {
    %c0_i32 = arith.constant 0 : i32
    return %arg0, %arg1 : i32, i32
  }
}

</mosaic_0001>

<llo_original>
// kernel: tpu_custom_call.1
$region0: #{tpu_custom_call.1}
  #allocation0 [shape = 'u32[]', space=smem, size = 0x4, offset = 0x4, fixed_abs, tag = 'smem constant byte address 0x4 - core index']
  #allocation1 [shape = 'u32[144,128]{1,0:T(1,128)}', space=vmem, size = 0x12000, scoped, tag = 'internal scratch']
  %s0 = inlined_call_operand.hbm [shape: f32[16,32], index: 0, kind: input, shape index: {}]
  %s1 = inlined_call_operand.hbm [shape: f32[32,32], index: 1, kind: input, shape index: {}]
  %s2 = inlined_call_operand.vmem [shape: f32[1,32], index: 2, kind: input, shape index: {}]
  %s3 = inlined_call_operand.hbm [shape: f32[16,32], index: 3, kind: output, shape index: {}]
  %s4 = sld [smem:[#allocation0]]
  $region30: #{tpu_custom_call.1} parent=0
    _
  %s6 = ssub.s32 1, %s4
  %s7 = scalar_select 0, %s6, %s4
  $region1: #{tpu_custom_call.1} parent=0
    #allocation2 [shape = 'u8[8192]{0}', space=vmem, size = 0x2000, scoped, tag = 'input window, operand 0, single buffered']
    #allocation3 [shape = 's32[1]{0}', space=sflag, size = 0x4, scoped, tag = 'scoped memory for tpu_custom_call.1']
    #allocation4 [shape = 's32[1]{0}', space=sflag, size = 0x4, scoped, tag = 'scoped memory for tpu_custom_call.1']
    #allocation5 [shape = 'u8[16384]{0}', space=vmem, size = 0x4000, scoped, tag = 'input window, operand 1, single buffered']
    #allocation6 [shape = 's32[1]{0}', space=sflag, size = 0x4, scoped, tag = 'scoped memory for tpu_custom_call.1']
    #allocation7 [shape = 'u8[8192]{0}', space=vmem, size = 0x2000, scoped, tag = 'output window, operand 0, single buffered']
    %8 = vsyncpa [#allocation3], 0
    %9 = vsyncpa [#allocation6], 0
    %10 = vsyncpa [#allocation4], 0
    // Predicated region
    $region2: #{tpu_custom_call.1} parent=1 // pred_check
      _
    $region3: #{tpu_custom_call.1} parent=1 // pred_check_branch
      %12 = sbr.rel (0) target = $region5
    $region4: #{tpu_custom_call.1} parent=1 // pred_region
      %s14 = ssub.s32 256, 256
      %15 = vsyncadd [#allocation3], %s14
      %s16 = sshll.u32 [#allocation2], 4
      %s17 = int_to_ptr.vmem [resolvable:$true] %s16
      %22 = dma.hbm_to_vmem [thread:$0]  %s0, 256, %s17, [#allocation3], 128, 128, 8
    $region5: #{tpu_custom_call.1} parent=1 // pred_fallthru
      _
    // Predicated region
    $region6: #{tpu_custom_call.1} parent=1 // pred_check
      _
    $region7: #{tpu_custom_call.1} parent=1 // pred_check_branch
      %24 = sbr.rel (0) target = $region9
    $region8: #{tpu_custom_call.1} parent=1 // pred_region
      %s26 = ssub.s32 512, 512
      %27 = vsyncadd [#allocation6], %s26
      %s28 = sshll.u32 [#allocation5], 4
      %s29 = int_to_ptr.vmem [resolvable:$true] %s28
      %34 = dma.hbm_to_vmem [thread:$0]  %s1, 512, %s29, [#allocation6], 128, 128, 8
    $region9: #{tpu_custom_call.1} parent=1 // pred_fallthru
      _
    // Predicated region
    $region10: #{tpu_custom_call.1} parent=1 // pred_check
      _
    $region11: #{tpu_custom_call.1} parent=1 // pred_check_branch
      %36 = sbr.rel (0) target = $region13
    $region12: #{tpu_custom_call.1} parent=1 // pred_region
      _
    $region13: #{tpu_custom_call.1} parent=1 // pred_fallthru
      _
    // Predicated region
    $region14: #{tpu_custom_call.1} parent=1 // pred_check
      _
    $region15: #{tpu_custom_call.1} parent=1 // pred_check_branch
      %38 = sbr.rel (0) target = $region17
    $region16: #{tpu_custom_call.1} parent=1 // pred_region
      %39 = dma.done [#allocation3], 256
    $region17: #{tpu_custom_call.1} parent=1 // pred_fallthru
      _
    // Predicated region
    $region18: #{tpu_custom_call.1} parent=1 // pred_check
      _
    $region19: #{tpu_custom_call.1} parent=1 // pred_check_branch
      %41 = sbr.rel (0) target = $region21
    $region20: #{tpu_custom_call.1} parent=1 // pred_region
      %42 = dma.done [#allocation6], 512
    $region21: #{tpu_custom_call.1} parent=1 // pred_fallthru
      _
    %v43 = vld [vmem:[#allocation2] sm:$0xff]
    %v44 = vld [vmem:[#allocation2 + $0x8] sm:$0xff]
    %v45 = vld [vmem:[#allocation5] sm:$0xff]
    %v46 = vld [vmem:[#allocation5 + $0x8] sm:$0xff]
    %v47 = vld [vmem:[#allocation5 + $0x10] sm:$0xff]
    %v48 = vld [vmem:[#allocation5 + $0x18] sm:$0xff]
    %v49 = vld [vmem:[%s2] sm:$0x1]
    %v51 = vlaneseq
    %v52 = vshrl.u32 %v51, 7
    %v53 = vsub.s32 0, %v52
    %v54 = vrot.slane %v49, %v53
    %vm56 = vcmask 261120
    %v58 = vsel %vm56, %v43, 0
    %v61 = vsel %vm56, %v44, 0
    %v64 = vsel %vm56, %v45, 0
    %v67 = vsel %vm56, %v46, 0
    %v70 = vsel %vm56, %v47, 0
    %v73 = vsel %vm56, %v48, 0
    %75 = vmatprep.subr.mxu0 0.0
    %76 = vmatpush1.xpose.msra.mxu0 0.0
    %77 = vmatprep.subr.mxu0 0.0
    %78 = vmatpush1.xpose.msra.mxu0 0.0
    %79 = vmatprep.subr.mxu0 0.0
    %80 = vmatpush1.xpose.msra.mxu0 0.0
    %81 = vmatprep.subr.mxu0 0.0
    %82 = vmatpush1.xpose.msra.mxu0 0.0
    %83 = vmatprep.subr.mxu0 0.0
    %84 = vmatpush1.xpose.msra.mxu0 0.0
    %85 = vmatprep.subr.mxu0 0.0
    %86 = vmatpush1.xpose.msra.mxu0 0.0
    %87 = vmatprep.subr.mxu0 0.0
    %88 = vmatpush1.xpose.msra.mxu0 0.0
    %89 = vmatprep.subr.mxu0 0.0
    %90 = vmatpush1.xpose.msra.mxu0 0.0
    %91 = vmatprep.subr.mxu0 0.0
    %92 = vmatpush1.xpose.msra.mxu0 0.0
    %93 = vmatprep.subr.mxu0 0.0
    %94 = vmatpush1.xpose.msra.mxu0 0.0
    %95 = vmatprep.subr.mxu0 0.0
    %96 = vmatpush1.xpose.msra.mxu0 0.0
    %97 = vmatprep.subr.mxu0 0.0
    %98 = vmatpush1.xpose.msra.mxu0 0.0
    %99 = vmatprep.subr.mxu0 0.0
    %100 = vmatpush1.xpose.msra.mxu0 %v73
    %101 = vmatprep.subr.mxu0 0.0
    %102 = vmatpush1.xpose.msra.mxu0 %v70
    %103 = vmatprep.subr.mxu0 0.0
    %104 = vmatpush1.xpose.msra.mxu0 %v67
    %105 = vmatprep.subr.mxu0 0.0
    %106 = vmatpush1.xpose.msra.mxu0 %v64
    %107 = vmatprep.subr.mxu0 0.0
    %108 = vmatpush2.xpose.msra.mxu0 0.0
    %109 = vmatprep.subr.mxu0 0.0
    %110 = vmatpush2.xpose.msra.mxu0 0.0
    %111 = vmatprep.subr.mxu0 0.0
    %112 = vmatpush2.xpose.msra.mxu0 0.0
    %113 = vmatprep.subr.mxu0 0.0
    %114 = vmatpush2.xpose.msra.mxu0 0.0
    %115 = vmatprep.subr.mxu0 0.0
    %116 = vmatpush2.xpose.msra.mxu0 0.0
    %117 = vmatprep.subr.mxu0 0.0
    %118 = vmatpush2.xpose.msra.mxu0 0.0
    %119 = vmatprep.subr.mxu0 0.0
    %120 = vmatpush2.xpose.msra.mxu0 0.0
    %121 = vmatprep.subr.mxu0 0.0
    %122 = vmatpush2.xpose.msra.mxu0 0.0
    %123 = vmatprep.subr.mxu0 0.0
    %124 = vmatpush2.xpose.msra.mxu0 0.0
    %125 = vmatprep.subr.mxu0 0.0
    %126 = vmatpush2.xpose.msra.mxu0 0.0
    %127 = vmatprep.subr.mxu0 0.0
    %128 = vmatpush2.xpose.msra.mxu0 0.0
    %129 = vmatprep.subr.mxu0 0.0
    %130 = vmatpush2.xpose.msra.mxu0 0.0
    %131 = vmatprep.subr.mxu0 0.0
    %132 = vmatpush2.xpose.msra.mxu0 0.0
    %133 = vmatprep.subr.mxu0 0.0
    %134 = vmatpush2.xpose.msra.mxu0 0.0
    %135 = vmatprep.subr.mxu0 0.0
    %136 = vmatpush2.xpose.msra.mxu0 0.0
    %137 = vmatprep.subr.mxu0 0.0
    %138 = vmatpush2.xpose.msra.mxu0 0.0
    %139 = vmatprep.mubr.f32.mxu0 0.0
    %140 = vmatmul.mubr.f32.gmra.mxu0 %v58
    %v141 = vpop.f32.mrf.mxu0
    %v142 = vadd.f32 %v54, %v141
    %v143 = vpop.f32.mrf.mxu0
    %144 = vmatprep.mubr.f32.mxu0 0.0
    %145 = vmatmul.mubr.f32.gmra.mxu0 %v61
    %v146 = vpop.f32.mrf.mxu0
    %v147 = vadd.f32 %v54, %v146
    %v148 = vpop.f32.mrf.mxu0
    %149 = vdwg.mxu0
    %v150 = vmul.f32 %v142, 0.5
    %v151 = vmul.f32 %v147, 0.5
    %v152 = vmul.f32 %v142, 0.70710677
    %v153 = vmul.f32 %v147, 0.70710677
    %v154 = verf.f32.pop %v152
    %v155 = verf.f32.pop %v153
    %v156 = vadd.f32 %v154, 1.0
    %v157 = vadd.f32 %v155, 1.0
    %v158 = vmul.f32 %v150, %v156
    %v159 = vmul.f32 %v151, %v157
    %v160 = vadd.f32 %v43, %v158
    %v161 = vadd.f32 %v44, %v159
    %162 = vst.msk [vmem:[#allocation7] sm:$0xff] %vm56, %v160
    %163 = vst.msk [vmem:[#allocation7 + $0x8] sm:$0xff] %vm56, %v161
    // Predicated region
    $region22: #{tpu_custom_call.1} parent=1 // pred_check
      _
    $region23: #{tpu_custom_call.1} parent=1 // pred_check_branch
      %165 = sbr.rel (0) target = $region25
    $region24: #{tpu_custom_call.1} parent=1 // pred_region
      %s167 = ssub.s32 256, 256
      %168 = vsyncadd [#allocation4], %s167
      %s169 = sshll.u32 [#allocation7], 4
      %s170 = int_to_ptr.vmem [resolvable:$true] %s169
      %175 = dma.vmem_to_hbm [thread:$0]  %s170, 256, %s3, [#allocation4], 128, 128, 8
    $region25: #{tpu_custom_call.1} parent=1 // pred_fallthru
      _
    // Predicated region
    $region26: #{tpu_custom_call.1} parent=1 // pred_check
      _
    $region27: #{tpu_custom_call.1} parent=1 // pred_check_branch
      %177 = sbr.rel (0) target = $region29
    $region28: #{tpu_custom_call.1} parent=1 // pred_region
      %178 = dma.done [#allocation4], 256
    $region29: #{tpu_custom_call.1} parent=1 // pred_fallthru
      _
    %179 = vsyncpa [#allocation3], 1
    %180 = vsyncpa [#allocation6], 1
    %181 = vsyncpa [#allocation4], 1

</llo_original>
